<compile_context>
chip_gen: v7x
topology: tpu7x:2x2x1
jax: 0.10.0
libtpu: 0.0.40
codegen_flags: <defaults>
</compile_context>

<pallas_src>
import functools
import math

import jax
import jax.numpy as jnp
from jax.experimental import pallas as pl
from jax.experimental.pallas import tpu as pltpu

_LANE = 128
_SUBLANE = 8


def _round_up(x, m):
    return (x + m - 1) // m * m


def _pick_batch_tile(b, block_batch):
    """Large 8-aligned batch tile, capped at the (8-rounded) batch size."""
    tb = min(block_batch, _round_up(b, _SUBLANE))
    tb = _round_up(tb, _SUBLANE)
    b_pad = _round_up(b, tb)
    return tb, b_pad


def _prep_params(mean, std, *, n, k, n_pad, k_pad, c1_pad_value):
    """Derived GMM parameter tensors, zero-padded to lane-dense shapes.

    Returns:
      inv_var      (Np, Kp)  1/std^2             (zeros in padding)
      mean_inv_var (Np, Kp)  mean/std^2          (zeros in padding)
      c1           (1,  Kp)  sum_n -log(std^2*2pi)  (padding = c1_pad_value)
      c2           (1,  Kp)  sum_n mean^2/std^2     (zeros in padding)
    """
    mean2 = jnp.asarray(mean, jnp.float32).reshape(n, k)
    var = jnp.square(jnp.asarray(std, jnp.float32).reshape(n, k))
    inv_var = 1.0 / var
    w_iv = jnp.pad(inv_var, ((0, n_pad - n), (0, k_pad - k)))
    w_miv = jnp.pad(mean2 * inv_var, ((0, n_pad - n), (0, k_pad - k)))
    c1 = jnp.sum(-jnp.log(var * (2.0 * math.pi)), axis=0, keepdims=True)
    c2 = jnp.sum(mean2 * mean2 * inv_var, axis=0, keepdims=True)
    c1 = jnp.pad(c1, ((0, 0), (0, k_pad - k)), constant_values=c1_pad_value)
    c2 = jnp.pad(c2, ((0, 0), (0, k_pad - k)))
    return w_iv, w_miv, c1, c2


# --------------------------------------------------------------------------
# compute_prob
# --------------------------------------------------------------------------
def _gmm_prob_kernel(x_ref, iv_ref, miv_ref, c1_ref, c2_ref, out_ref):
    x = x_ref[...]                                            # (TB, Np) f32
    # sum_n (d - m)^2 / var  ==  d^2 @ iv  -  2 * d @ (m*iv)  +  c2[k]
    a = jnp.dot(x * x, iv_ref[...], preferred_element_type=jnp.float32)
    bm = jnp.dot(x, miv_ref[...], preferred_element_type=jnp.float32)
    dist = a - 2.0 * bm + c2_ref[...]
    expo = 0.5 * (c1_ref[...] - dist)                         # padded k: c1 = -1e30 -> exp = 0
    prob = jnp.exp(expo)
    denom = jnp.sum(prob, axis=-1, keepdims=True) + 1e-10
    out_ref[...] = prob / denom


@functools.partial(jax.jit, static_argnames=("block_batch", "single_buffer_params"))
def gmm_compute_prob(data, mean, std, *, block_batch=256, single_buffer_params=False):
    b, n = data.shape
    k = mean.shape[-1]
    n_pad = _round_up(n, _LANE)
    k_pad = _round_up(k, _LANE)
    tb, b_pad = _pick_batch_tile(b, block_batch)

    w_iv, w_miv, c1, c2 = _prep_params(
        mean, std, n=n, k=k, n_pad=n_pad, k_pad=k_pad, c1_pad_value=-1e30)
    x = jnp.pad(data.astype(jnp.float32), ((0, b_pad - b), (0, n_pad - n)))

    # Parameter blocks have constant index maps; they are not re-DMA'd per step.
    # On VMEM-tight chips (v7x) they can additionally be single-buffered.
    pmode = pl.Buffered(1) if single_buffer_params else None

    def _param_spec(shape):
        if pmode is None:
            return pl.BlockSpec(shape, lambda i: (0, 0))
        return pl.BlockSpec(shape, lambda i: (0, 0), pipeline_mode=pmode)

    flops = 2 * 2 * b_pad * n_pad * k_pad + 6 * b_pad * k_pad
    bytes_accessed = 4 * (b_pad * n_pad + 2 * n_pad * k_pad + 2 * k_pad + b_pad * k_pad)
    vmem_need = 4 * (2 * tb * n_pad + 2 * tb * k_pad
                     + 2 * (2 * n_pad * k_pad + 2 * k_pad))
    vmem_limit = int(min(max(2 * vmem_need, 16 * 2**20), 64 * 2**20))

    out = pl.pallas_call(
        _gmm_prob_kernel,
        out_shape=jax.ShapeDtypeStruct((b_pad, k_pad), jnp.float32),
        grid_spec=pltpu.PrefetchScalarGridSpec(
            num_scalar_prefetch=0,
            grid=(b_pad // tb,),
            in_specs=[
                pl.BlockSpec((tb, n_pad), lambda i: (i, 0)),   # data tile (lane-dense)
                _param_spec((n_pad, k_pad)),                   # 1/var
                _param_spec((n_pad, k_pad)),                   # mean/var
                _param_spec((1, k_pad)),                       # c1
                _param_spec((1, k_pad)),                       # c2
            ],
            out_specs=pl.BlockSpec((tb, k_pad), lambda i: (i, 0)),
        ),
        compiler_params=pltpu.CompilerParams(
            dimension_semantics=("parallel",),                 # shard batch over both TCs (v7x)
            vmem_limit_bytes=vmem_limit,
        ),
        cost_estimate=pl.CostEstimate(
            flops=flops, transcendentals=b_pad * k_pad, bytes_accessed=bytes_accessed),
    )(x, w_iv, w_miv, c1, c2)
    return out[:b, :k].astype(data.dtype)


# --------------------------------------------------------------------------
# log_prob
# --------------------------------------------------------------------------
def _gmm_logprob_kernel(dm_ref, dlv_ref, cp_ref, w_ref,
                        iv_ref, miv_ref, c1_ref, c2_ref, out_ref):
    dm = dm_ref[...]
    dlv = dlv_ref[...]
    a = jnp.dot(dm * dm, iv_ref[...], preferred_element_type=jnp.float32)
    bm = jnp.dot(dm, miv_ref[...], preferred_element_type=jnp.float32)
    e = jnp.dot(jnp.exp(dlv), iv_ref[...], preferred_element_type=jnp.float32)
    term2 = -0.5 * (a - 2.0 * bm + c2_ref[...] + e)
    prob = term2 + 0.5 * c1_ref[...]
    log_p1 = jnp.sum(prob * cp_ref[...], axis=-1, keepdims=True)
    out_ref[...] = log_p1 * w_ref[...]


@functools.partial(jax.jit, static_argnames=("block_batch",))
def gmm_log_prob(data_mean, data_logvar, cond_prob, weight, mean, std, *, block_batch=256):
    b, n = data_mean.shape
    k = mean.shape[-1]
    n_pad = _round_up(n, _LANE)
    k_pad = _round_up(k, _LANE)
    tb, b_pad = _pick_batch_tile(b, block_batch)

    w_iv, w_miv, c1, c2 = _prep_params(
        mean, std, n=n, k=k, n_pad=n_pad, k_pad=k_pad, c1_pad_value=0.0)
    dm = jnp.pad(data_mean.astype(jnp.float32), ((0, b_pad - b), (0, n_pad - n)))
    dlv = jnp.pad(data_logvar.astype(jnp.float32), ((0, b_pad - b), (0, n_pad - n)))
    cp = jnp.pad(cond_prob.astype(jnp.float32), ((0, b_pad - b), (0, k_pad - k)))
    w = jnp.pad(weight.astype(jnp.float32).reshape(b, 1), ((0, b_pad - b), (0, 0)))

    out = pl.pallas_call(
        _gmm_logprob_kernel,
        out_shape=jax.ShapeDtypeStruct((b_pad, 1), jnp.float32),
        grid_spec=pltpu.PrefetchScalarGridSpec(
            num_scalar_prefetch=0,
            grid=(b_pad // tb,),
            in_specs=[
                pl.BlockSpec((tb, n_pad), lambda i: (i, 0)),   # data_mean
                pl.BlockSpec((tb, n_pad), lambda i: (i, 0)),   # data_logvar
                pl.BlockSpec((tb, k_pad), lambda i: (i, 0)),   # cond_prob
                pl.BlockSpec((tb, 1), lambda i: (i, 0)),       # weight
                pl.BlockSpec((n_pad, k_pad), lambda i: (0, 0)),
                pl.BlockSpec((n_pad, k_pad), lambda i: (0, 0)),
                pl.BlockSpec((1, k_pad), lambda i: (0, 0)),
                pl.BlockSpec((1, k_pad), lambda i: (0, 0)),
            ],
            out_specs=pl.BlockSpec((tb, 1), lambda i: (i, 0)),
        ),
        compiler_params=pltpu.CompilerParams(dimension_semantics=("parallel",)),
        cost_estimate=pl.CostEstimate(
            flops=3 * 2 * b_pad * n_pad * k_pad,
            transcendentals=b_pad * n_pad,
            bytes_accessed=4 * (3 * b_pad * n_pad + 2 * b_pad * k_pad + 2 * n_pad * k_pad)),
    )(dm, dlv, cp, w, w_iv, w_miv, c1, c2)
    return jnp.sum(out[:b, 0])


# --------------------------------------------------------------------------
# compute_entropy
# --------------------------------------------------------------------------
def _gmm_entropy_kernel(p_ref, w_ref, out_ref):
    p = p_ref[...]
    ent = jnp.sum(-p * jnp.log(p + 1e-10), axis=-1, keepdims=True)
    out_ref[...] = ent * w_ref[...]


@functools.partial(jax.jit, static_argnames=("block_batch",))
def gmm_compute_entropy(inputs, weight, *, block_batch=256):
    b, k = inputs.shape
    k_pad = _round_up(k, _LANE)
    tb, b_pad = _pick_batch_tile(b, block_batch)
    p = jnp.pad(inputs.astype(jnp.float32), ((0, b_pad - b), (0, k_pad - k)))
    w = jnp.pad(weight.astype(jnp.float32).reshape(b, 1), ((0, b_pad - b), (0, 0)))

    out = pl.pallas_call(
        _gmm_entropy_kernel,
        out_shape=jax.ShapeDtypeStruct((b_pad, 1), jnp.float32),
        grid_spec=pltpu.PrefetchScalarGridSpec(
            num_scalar_prefetch=0,
            grid=(b_pad // tb,),
            in_specs=[
                pl.BlockSpec((tb, k_pad), lambda i: (i, 0)),
                pl.BlockSpec((tb, 1), lambda i: (i, 0)),
            ],
            out_specs=pl.BlockSpec((tb, 1), lambda i: (i, 0)),
        ),
        compiler_params=pltpu.CompilerParams(dimension_semantics=("parallel",)),
    )(p, w)
    return jnp.sum(out[:b, 0])


# --------------------------------------------------------------------------
# Thin module-like wrapper mirroring GMM_Model
# --------------------------------------------------------------------------
class GMMModelPallas:
    def __init__(self, N, K, mean=None, var=None, prior=None, key=None):
        if mean is not None:
            self.mean = jnp.asarray(mean, jnp.float32).reshape(1, N, K)
            self.std = jnp.sqrt(jnp.asarray(var, jnp.float32)).reshape(1, N, K)
        else:
            key = jax.random.PRNGKey(0) if key is None else key
            self.mean = jax.random.normal(key, (1, N, K), jnp.float32)
            self.std = jnp.ones((1, N, K), jnp.float32)
        self.N, self.K = N, K

    def get_para(self):
        return self.mean, self.std

    def compute_prob(self, data):
        return gmm_compute_prob(data, self.mean, self.std)

    def log_prob(self, data_mean, data_logvar, cond_prob, weight):
        return gmm_log_prob(data_mean, data_logvar, cond_prob, weight, self.mean, self.std)

    def compute_entropy(self, inputs, weight):
        return gmm_compute_entropy(inputs, weight)

    def reg(self):
        # TODO(synk): reg() is a parameter-only O(N*K) reduction; left in plain JAX
        # (no batch work worth a Pallas kernel).
        m = self.mean.reshape(self.N, self.K)
        return jnp.sum((jnp.sum(m * m, axis=0) - float(self.K)) ** 2)

    def forward(self):
        # Original PyTorch forward() is `pass` (no computation).
        return None


if __name__ == "__main__":
    key = jax.random.PRNGKey(0)
    k1, k2, k3, k4, k5, k6 = jax.random.split(key, 6)

    B, N, K = 32, 16, 8
    model = GMMModelPallas(N, K, key=k1)
    mean, std = model.get_para()            # (1, N, K) each
    var = std ** 2

    # ---- compute_prob ----
    data = 0.5 * jax.random.normal(k2, (B, N), jnp.float32)
    pc = jax.block_until_ready(model.compute_prob(data))

    expo_ref = jnp.sum(-jnp.log(var * 2.0 * math.pi)
                       - (data[:, :, None] - mean) ** 2 / var, axis=1) * 0.5
    prob_ref = jnp.exp(expo_ref)
    pc_ref = prob_ref / (jnp.sum(prob_ref, axis=-1, keepdims=True) + 1e-10)
    assert pc.shape == (B, K)
    assert jnp.allclose(pc, pc_ref, atol=1e-5, rtol=1e-4), float(jnp.max(jnp.abs(pc - pc_ref)))

    # ---- log_prob ----
    data_mean = 0.5 * jax.random.normal(k3, (B, N), jnp.float32)
    data_logvar = 0.5 * jax.random.normal(k4, (B, N), jnp.float32) - 1.0
    cond_prob = jax.nn.softmax(jax.random.normal(k5, (B, K), jnp.float32), axis=-1)
    weight = jax.random.uniform(k6, (B,), jnp.float32, minval=0.5, maxval=1.5)

    lp = jax.block_until_ready(model.log_prob(data_mean, data_logvar, cond_prob, weight))

    term1 = jnp.sum(-jnp.log(var * 2.0 * math.pi), axis=1) * 0.5
    term2 = jnp.sum(-((data_mean[:, :, None] - mean) ** 2
                      + jnp.exp(data_logvar)[:, :, None]) / var, axis=1) * 0.5
    lp_ref = jnp.sum(jnp.sum((term2 + term1) * cond_prob, axis=-1) * weight)
    assert jnp.allclose(lp, lp_ref, atol=1e-2, rtol=1e-4), (float(lp), float(lp_ref))

    # ---- compute_entropy ----
    ent = jax.block_until_ready(model.compute_entropy(cond_prob, weight))
    ent_ref = jnp.sum(jnp.sum(-cond_prob * jnp.log(cond_prob + 1e-10), axis=-1) * weight)
    assert jnp.allclose(ent, ent_ref, atol=1e-3, rtol=1e-4), (float(ent), float(ent_ref))

    print("KERNEL_OK")
</pallas_src>

<mosaic_0001>
module attributes {stable_mosaic.version = 11 : i64} {
  func.func @_gmm_prob_kernel(%arg0: i32, %arg1: memref<32x128xf32, #tpu.memory_space<vmem>>, %arg2: memref<128x128xf32, #tpu.memory_space<vmem>>, %arg3: memref<128x128xf32, #tpu.memory_space<vmem>>, %arg4: memref<1x128xf32, #tpu.memory_space<vmem>>, %arg5: memref<1x128xf32, #tpu.memory_space<vmem>>, %arg6: memref<32x128xf32, #tpu.memory_space<vmem>>) attributes {dimension_semantics = [#tpu.dimension_semantics<parallel>], iteration_bounds = array<i64: 1>, scalar_prefetch = 0 : i64, scratch_operands = 0 : i64, tpu.core_type = #tpu.core_type<tc>, window_params = [{transform_indices = @transform_0, window_bounds = array<i64: 32, 128>}, {pipeline_mode = #tpu.pipeline_mode<synchronous>, transform_indices = @transform_1, window_bounds = array<i64: 128, 128>}, {pipeline_mode = #tpu.pipeline_mode<synchronous>, transform_indices = @transform_2, window_bounds = array<i64: 128, 128>}, {pipeline_mode = #tpu.pipeline_mode<synchronous>, transform_indices = @transform_3, window_bounds = array<i64: 1, 128>}, {pipeline_mode = #tpu.pipeline_mode<synchronous>, transform_indices = @transform_4, window_bounds = array<i64: 1, 128>}, {transform_indices = @transform_5, window_bounds = array<i64: 32, 128>}]} {
    %c0 = arith.constant 0 : index
    %c0_0 = arith.constant 0 : index
    %0 = vector.load %arg1[%c0, %c0_0] : memref<32x128xf32, #tpu.memory_space<vmem>>, vector<32x128xf32>
    %1 = arith.mulf %0, %0 : vector<32x128xf32>
    %c0_1 = arith.constant 0 : index
    %c0_2 = arith.constant 0 : index
    %2 = vector.load %arg2[%c0_1, %c0_2] : memref<128x128xf32, #tpu.memory_space<vmem>>, vector<128x128xf32>
    %cst = arith.constant dense<0.000000e+00> : vector<32x128xf32>
    %3 = tpu.matmul %1, %2, %cst {dimension_numbers = #tpu.dot_dimension_numbers<[1], [0], [0], [1], [0, 0, 1, 1], [], []>} : vector<32x128xf32>, vector<128x128xf32>, vector<32x128xf32> -> vector<32x128xf32>
    %c0_3 = arith.constant 0 : index
    %c0_4 = arith.constant 0 : index
    %4 = vector.load %arg3[%c0_3, %c0_4] : memref<128x128xf32, #tpu.memory_space<vmem>>, vector<128x128xf32>
    %cst_5 = arith.constant dense<0.000000e+00> : vector<32x128xf32>
    %5 = tpu.matmul %0, %4, %cst_5 {dimension_numbers = #tpu.dot_dimension_numbers<[1], [0], [0], [1], [0, 0, 1, 1], [], []>} : vector<32x128xf32>, vector<128x128xf32>, vector<32x128xf32> -> vector<32x128xf32>
    %cst_6 = arith.constant 2.000000e+00 : f32
    %6 = vector.broadcast %cst_6 : f32 to vector<32x128xf32>
    %7 = arith.mulf %6, %5 : vector<32x128xf32>
    %8 = arith.subf %3, %7 : vector<32x128xf32>
    %c0_7 = arith.constant 0 : index
    %c0_8 = arith.constant 0 : index
    %9 = vector.load %arg5[%c0_7, %c0_8] : memref<1x128xf32, #tpu.memory_space<vmem>>, vector<1x128xf32>
    %10 = vector.broadcast %9 : vector<1x128xf32> to vector<32x128xf32>
    %11 = arith.addf %8, %10 : vector<32x128xf32>
    %c0_9 = arith.constant 0 : index
    %c0_10 = arith.constant 0 : index
    %12 = vector.load %arg4[%c0_9, %c0_10] : memref<1x128xf32, #tpu.memory_space<vmem>>, vector<1x128xf32>
    %13 = vector.broadcast %12 : vector<1x128xf32> to vector<32x128xf32>
    %14 = arith.subf %13, %11 : vector<32x128xf32>
    %cst_11 = arith.constant 5.000000e-01 : f32
    %15 = vector.broadcast %cst_11 : f32 to vector<32x128xf32>
    %16 = arith.mulf %15, %14 : vector<32x128xf32>
    %17 = math.exp %16 : vector<32x128xf32>
    %cst_12 = arith.constant dense<0.000000e+00> : vector<32xf32>
    %18 = vector.multi_reduction <add>, %17, %cst_12 [1] : vector<32x128xf32> to vector<32xf32>
    %19 = vector.shape_cast %18 : vector<32xf32> to vector<32x1xf32>
    %cst_13 = arith.constant 1.000000e-10 : f32
    %20 = vector.broadcast %cst_13 : f32 to vector<32x1xf32>
    %21 = arith.addf %19, %20 : vector<32x1xf32>
    %22 = vector.broadcast %21 : vector<32x1xf32> to vector<32x128xf32>
    %23 = arith.divf %17, %22 : vector<32x128xf32>
    %c0_14 = arith.constant 0 : index
    %c0_15 = arith.constant 0 : index
    %24 = vector.load %arg6[%c0_14, %c0_15] : memref<32x128xf32, #tpu.memory_space<vmem>>, vector<32x128xf32>
    tpu.vector_store %arg6[%c0_14, %c0_15], %23 {strides = array<i32>} : memref<32x128xf32, #tpu.memory_space<vmem>>, vector<32x128xf32>,
    return
  }
  func.func @transform_0(%arg0: i32) -> (i32, i32) {
    %c0_i32 = arith.constant 0 : i32
    %c0_i32_0 = arith.constant 0 : i32
    return %arg0, %c0_i32 : i32, i32
  }
  func.func @transform_1(%arg0: i32) -> (i32, i32) {
    %c0_i32 = arith.constant 0 : i32
    %c0_i32_0 = arith.constant 0 : i32
    %c0_i32_1 = arith.constant 0 : i32
    return %c0_i32, %c0_i32_0 : i32, i32
  }
  func.func @transform_2(%arg0: i32) -> (i32, i32) {
    %c0_i32 = arith.constant 0 : i32
    %c0_i32_0 = arith.constant 0 : i32
    %c0_i32_1 = arith.constant 0 : i32
    return %c0_i32, %c0_i32_0 : i32, i32
  }
  func.func @transform_3(%arg0: i32) -> (i32, i32) {
    %c0_i32 = arith.constant 0 : i32
    %c0_i32_0 = arith.constant 0 : i32
    %c0_i32_1 = arith.constant 0 : i32
    return %c0_i32, %c0_i32_0 : i32, i32
  }
  func.func @transform_4(%arg0: i32) -> (i32, i32) {
    %c0_i32 = arith.constant 0 : i32
    %c0_i32_0 = arith.constant 0 : i32
    %c0_i32_1 = arith.constant 0 : i32
    return %c0_i32, %c0_i32_0 : i32, i32
  }
  func.func @transform_5(%arg0: i32) -> (i32, i32) {
    %c0_i32 = arith.constant 0 : i32
    %c0_i32_0 = arith.constant 0 : i32
    return %arg0, %c0_i32 : i32, i32
  }
}

</mosaic_0001>

<llo_original>
// kernel: gmm_compute_prob.1
$region0: #{gmm_compute_prob.1}
  #allocation0 [shape = 'u32[]', space=smem, size = 0x4, offset = 0x4, fixed_abs, tag = 'smem constant byte address 0x4 - core index']
  #allocation1 [shape = 'u32[144,128]{1,0:T(1,128)}', space=vmem, size = 0x12000, scoped, tag = 'internal scratch']
  %s0 = inlined_call_operand.vmem [shape: f32[32,128], index: 0, kind: input, shape index: {}]
  %s1 = inlined_call_operand.vmem [shape: f32[128,128], index: 1, kind: input, shape index: {}]
  %s2 = inlined_call_operand.vmem [shape: f32[128,128], index: 2, kind: input, shape index: {}]
  %s3 = inlined_call_operand.vmem [shape: f32[1,128], index: 3, kind: input, shape index: {}]
  %s4 = inlined_call_operand.vmem [shape: f32[1,128], index: 4, kind: input, shape index: {}]
  %s5 = inlined_call_operand.vmem [shape: f32[32,128], index: 5, kind: output, shape index: {}]
  %s6 = sld [smem:[#allocation0]]
  $region30: #{gmm_compute_prob.1} parent=0
    _
  %s8 = ssub.s32 1, %s6
  %s9 = scalar_select 0, %s8, %s6
  // Predicated region
  $region2: #{gmm_compute_prob.1} parent=0 // pred_check
    _
  $region3: #{gmm_compute_prob.1} parent=0 // pred_check_branch
    %11 = sbr.rel (0) target = $region5
  $region4: #{gmm_compute_prob.1} parent=0 // pred_region
    _
  $region5: #{gmm_compute_prob.1} parent=0 // pred_fallthru
    _
  // Predicated region
  $region6: #{gmm_compute_prob.1} parent=0 // pred_check
    _
  $region7: #{gmm_compute_prob.1} parent=0 // pred_check_branch
    %13 = sbr.rel (0) target = $region9
  $region8: #{gmm_compute_prob.1} parent=0 // pred_region
    _
  $region9: #{gmm_compute_prob.1} parent=0 // pred_fallthru
    _
  // Predicated region
  $region10: #{gmm_compute_prob.1} parent=0 // pred_check
    _
  $region11: #{gmm_compute_prob.1} parent=0 // pred_check_branch
    %15 = sbr.rel (0) target = $region13
  $region12: #{gmm_compute_prob.1} parent=0 // pred_region
    _
  $region13: #{gmm_compute_prob.1} parent=0 // pred_fallthru
    _
  // Predicated region
  $region14: #{gmm_compute_prob.1} parent=0 // pred_check
    _
  $region15: #{gmm_compute_prob.1} parent=0 // pred_check_branch
    %17 = sbr.rel (0) target = $region17
  $region16: #{gmm_compute_prob.1} parent=0 // pred_region
    _
  $region17: #{gmm_compute_prob.1} parent=0 // pred_fallthru
    _
  // Predicated region
  $region18: #{gmm_compute_prob.1} parent=0 // pred_check
    _
  $region19: #{gmm_compute_prob.1} parent=0 // pred_check_branch
    %19 = sbr.rel (0) target = $region21
  $region20: #{gmm_compute_prob.1} parent=0 // pred_region
    _
  $region21: #{gmm_compute_prob.1} parent=0 // pred_fallthru
    _
  %v20 = vld [vmem:[%s0] sm:$0xff]
  %v21 = vld [vmem:[%s0 + $0x8] sm:$0xff]
  %v22 = vld [vmem:[%s0 + $0x10] sm:$0xff]
  %v23 = vld [vmem:[%s0 + $0x18] sm:$0xff]
  %v24 = vmul.f32 %v20, %v20
  %v25 = vmul.f32 %v21, %v21
  %v26 = vmul.f32 %v22, %v22
  %v27 = vmul.f32 %v23, %v23
  %v28 = vld [vmem:[%s1] sm:$0xff]
  %v29 = vld [vmem:[%s1 + $0x8] sm:$0xff]
  %v30 = vld [vmem:[%s1 + $0x10] sm:$0xff]
  %v31 = vld [vmem:[%s1 + $0x18] sm:$0xff]
  %v32 = vld [vmem:[%s1 + $0x20] sm:$0xff]
  %v33 = vld [vmem:[%s1 + $0x28] sm:$0xff]
  %v34 = vld [vmem:[%s1 + $0x30] sm:$0xff]
  %v35 = vld [vmem:[%s1 + $0x38] sm:$0xff]
  %v36 = vld [vmem:[%s1 + $0x40] sm:$0xff]
  %v37 = vld [vmem:[%s1 + $0x48] sm:$0xff]
  %v38 = vld [vmem:[%s1 + $0x50] sm:$0xff]
  %v39 = vld [vmem:[%s1 + $0x58] sm:$0xff]
  %v40 = vld [vmem:[%s1 + $0x60] sm:$0xff]
  %v41 = vld [vmem:[%s1 + $0x68] sm:$0xff]
  %v42 = vld [vmem:[%s1 + $0x70] sm:$0xff]
  %v43 = vld [vmem:[%s1 + $0x78] sm:$0xff]
  %44 = vmatprep.subr.mxu0 0.0
  %45 = vmatpush1.msra.mxu0 %v28
  %46 = vmatprep.subr.mxu0 0.0
  %47 = vmatpush1.msra.mxu0 %v29
  %48 = vmatprep.subr.mxu0 0.0
  %49 = vmatpush1.msra.mxu0 %v30
  %50 = vmatprep.subr.mxu0 0.0
  %51 = vmatpush1.msra.mxu0 %v31
  %52 = vmatprep.subr.mxu0 0.0
  %53 = vmatpush1.msra.mxu0 %v32
  %54 = vmatprep.subr.mxu0 0.0
  %55 = vmatpush1.msra.mxu0 %v33
  %56 = vmatprep.subr.mxu0 0.0
  %57 = vmatpush1.msra.mxu0 %v34
  %58 = vmatprep.subr.mxu0 0.0
  %59 = vmatpush1.msra.mxu0 %v35
  %60 = vmatprep.subr.mxu0 0.0
  %61 = vmatpush1.msra.mxu0 %v36
  %62 = vmatprep.subr.mxu0 0.0
  %63 = vmatpush1.msra.mxu0 %v37
  %64 = vmatprep.subr.mxu0 0.0
  %65 = vmatpush1.msra.mxu0 %v38
  %66 = vmatprep.subr.mxu0 0.0
  %67 = vmatpush1.msra.mxu0 %v39
  %68 = vmatprep.subr.mxu0 0.0
  %69 = vmatpush1.msra.mxu0 %v40
  %70 = vmatprep.subr.mxu0 0.0
  %71 = vmatpush1.msra.mxu0 %v41
  %72 = vmatprep.subr.mxu0 0.0
  %73 = vmatpush1.msra.mxu0 %v42
  %74 = vmatprep.subr.mxu0 0.0
  %75 = vmatpush1.msra.mxu0 %v43
  %76 = vmatprep.subr.mxu0 0.0
  %77 = vmatpush1.msra.mxu0 0.0
  %78 = vmatprep.subr.mxu0 0.0
  %79 = vmatpush1.msra.mxu0 0.0
  %80 = vmatprep.subr.mxu0 0.0
  %81 = vmatpush1.msra.mxu0 0.0
  %82 = vmatprep.subr.mxu0 0.0
  %83 = vmatpush1.msra.mxu0 0.0
  %84 = vmatprep.subr.mxu0 0.0
  %85 = vmatpush1.msra.mxu0 0.0
  %86 = vmatprep.subr.mxu0 0.0
  %87 = vmatpush1.msra.mxu0 0.0
  %88 = vmatprep.subr.mxu0 0.0
  %89 = vmatpush1.msra.mxu0 0.0
  %90 = vmatprep.subr.mxu0 0.0
  %91 = vmatpush1.msra.mxu0 0.0
  %92 = vmatprep.subr.mxu0 0.0
  %93 = vmatpush1.msra.mxu0 0.0
  %94 = vmatprep.subr.mxu0 0.0
  %95 = vmatpush1.msra.mxu0 0.0
  %96 = vmatprep.subr.mxu0 0.0
  %97 = vmatpush1.msra.mxu0 0.0
  %98 = vmatprep.subr.mxu0 0.0
  %99 = vmatpush1.msra.mxu0 0.0
  %100 = vmatprep.subr.mxu0 0.0
  %101 = vmatpush1.msra.mxu0 0.0
  %102 = vmatprep.subr.mxu0 0.0
  %103 = vmatpush1.msra.mxu0 0.0
  %104 = vmatprep.subr.mxu0 0.0
  %105 = vmatpush1.msra.mxu0 0.0
  %106 = vmatprep.subr.mxu0 0.0
  %107 = vmatpush1.msra.mxu0 0.0
  %108 = vmatprep.mubr.f32.mxu0 0.0
  %109 = vmatmul.mubr.f32.gmra.mrb[0].mxu0 %v24
  %v110 = vpop.f32.mrb[0].mxu0
  %v111 = vadd.f32 0.0, %v110
  %v112 = vpop.f32.mrb[0].mxu0
  %113 = vmatprep.mubr.f32.mxu0 0.0
  %114 = vmatmul.mubr.f32.gmra.mrb[0].mxu0 %v25
  %v115 = vpop.f32.mrb[0].mxu0
  %v116 = vadd.f32 0.0, %v115
  %v117 = vpop.f32.mrb[0].mxu0
  %118 = vmatprep.mubr.f32.mxu0 0.0
  %119 = vmatmul.mubr.f32.gmra.mrb[0].mxu0 %v26
  %v120 = vpop.f32.mrb[0].mxu0
  %v121 = vadd.f32 0.0, %v120
  %v122 = vpop.f32.mrb[0].mxu0
  %123 = vmatprep.mubr.f32.mxu0 0.0
  %124 = vmatmul.mubr.f32.gmra.mrb[0].mxu0 %v27
  %v125 = vpop.f32.mrb[0].mxu0
  %v126 = vadd.f32 0.0, %v125
  %v127 = vpop.f32.mrb[0].mxu0
  %128 = vdwg.mxu0
  %v129 = vld [vmem:[%s2] sm:$0xff]
  %v130 = vld [vmem:[%s2 + $0x8] sm:$0xff]
  %v131 = vld [vmem:[%s2 + $0x10] sm:$0xff]
  %v132 = vld [vmem:[%s2 + $0x18] sm:$0xff]
  %v133 = vld [vmem:[%s2 + $0x20] sm:$0xff]
  %v134 = vld [vmem:[%s2 + $0x28] sm:$0xff]
  %v135 = vld [vmem:[%s2 + $0x30] sm:$0xff]
  %v136 = vld [vmem:[%s2 + $0x38] sm:$0xff]
  %v137 = vld [vmem:[%s2 + $0x40] sm:$0xff]
  %v138 = vld [vmem:[%s2 + $0x48] sm:$0xff]
  %v139 = vld [vmem:[%s2 + $0x50] sm:$0xff]
  %v140 = vld [vmem:[%s2 + $0x58] sm:$0xff]
  %v141 = vld [vmem:[%s2 + $0x60] sm:$0xff]
  %v142 = vld [vmem:[%s2 + $0x68] sm:$0xff]
  %v143 = vld [vmem:[%s2 + $0x70] sm:$0xff]
  %v144 = vld [vmem:[%s2 + $0x78] sm:$0xff]
  %145 = vmatprep.subr.mxu0 0.0
  %146 = vmatpush1.msra.mxu0 %v129
  %147 = vmatprep.subr.mxu0 0.0
  %148 = vmatpush1.msra.mxu0 %v130
  %149 = vmatprep.subr.mxu0 0.0
  %150 = vmatpush1.msra.mxu0 %v131
  %151 = vmatprep.subr.mxu0 0.0
  %152 = vmatpush1.msra.mxu0 %v132
  %153 = vmatprep.subr.mxu0 0.0
  %154 = vmatpush1.msra.mxu0 %v133
  %155 = vmatprep.subr.mxu0 0.0
  %156 = vmatpush1.msra.mxu0 %v134
  %157 = vmatprep.subr.mxu0 0.0
  %158 = vmatpush1.msra.mxu0 %v135
  %159 = vmatprep.subr.mxu0 0.0
  %160 = vmatpush1.msra.mxu0 %v136
  %161 = vmatprep.subr.mxu0 0.0
  %162 = vmatpush1.msra.mxu0 %v137
  %163 = vmatprep.subr.mxu0 0.0
  %164 = vmatpush1.msra.mxu0 %v138
  %165 = vmatprep.subr.mxu0 0.0
  %166 = vmatpush1.msra.mxu0 %v139
  %167 = vmatprep.subr.mxu0 0.0
  %168 = vmatpush1.msra.mxu0 %v140
  %169 = vmatprep.subr.mxu0 0.0
  %170 = vmatpush1.msra.mxu0 %v141
  %171 = vmatprep.subr.mxu0 0.0
  %172 = vmatpush1.msra.mxu0 %v142
  %173 = vmatprep.subr.mxu0 0.0
  %174 = vmatpush1.msra.mxu0 %v143
  %175 = vmatprep.subr.mxu0 0.0
  %176 = vmatpush1.msra.mxu0 %v144
  %177 = vmatprep.subr.mxu0 0.0
  %178 = vmatpush1.msra.mxu0 0.0
  %179 = vmatprep.subr.mxu0 0.0
  %180 = vmatpush1.msra.mxu0 0.0
  %181 = vmatprep.subr.mxu0 0.0
  %182 = vmatpush1.msra.mxu0 0.0
  %183 = vmatprep.subr.mxu0 0.0
  %184 = vmatpush1.msra.mxu0 0.0
  %185 = vmatprep.subr.mxu0 0.0
  %186 = vmatpush1.msra.mxu0 0.0
  %187 = vmatprep.subr.mxu0 0.0
  %188 = vmatpush1.msra.mxu0 0.0
  %189 = vmatprep.subr.mxu0 0.0
  %190 = vmatpush1.msra.mxu0 0.0
  %191 = vmatprep.subr.mxu0 0.0
  %192 = vmatpush1.msra.mxu0 0.0
  %193 = vmatprep.subr.mxu0 0.0
  %194 = vmatpush1.msra.mxu0 0.0
  %195 = vmatprep.subr.mxu0 0.0
  %196 = vmatpush1.msra.mxu0 0.0
  %197 = vmatprep.subr.mxu0 0.0
  %198 = vmatpush1.msra.mxu0 0.0
  %199 = vmatprep.subr.mxu0 0.0
  %200 = vmatpush1.msra.mxu0 0.0
  %201 = vmatprep.subr.mxu0 0.0
  %202 = vmatpush1.msra.mxu0 0.0
  %203 = vmatprep.subr.mxu0 0.0
  %204 = vmatpush1.msra.mxu0 0.0
  %205 = vmatprep.subr.mxu0 0.0
  %206 = vmatpush1.msra.mxu0 0.0
  %207 = vmatprep.subr.mxu0 0.0
  %208 = vmatpush1.msra.mxu0 0.0
  %209 = vmatprep.mubr.f32.mxu0 0.0
  %210 = vmatmul.mubr.f32.gmra.mrb[0].mxu0 %v20
  %v211 = vpop.f32.mrb[0].mxu0
  %v212 = vadd.f32 0.0, %v211
  %v213 = vpop.f32.mrb[0].mxu0
  %214 = vmatprep.mubr.f32.mxu0 0.0
  %215 = vmatmul.mubr.f32.gmra.mrb[0].mxu0 %v21
  %v216 = vpop.f32.mrb[0].mxu0
  %v217 = vadd.f32 0.0, %v216
  %v218 = vpop.f32.mrb[0].mxu0
  %219 = vmatprep.mubr.f32.mxu0 0.0
  %220 = vmatmul.mubr.f32.gmra.mrb[0].mxu0 %v22
  %v221 = vpop.f32.mrb[0].mxu0
  %v222 = vadd.f32 0.0, %v221
  %v223 = vpop.f32.mrb[0].mxu0
  %224 = vmatprep.mubr.f32.mxu0 0.0
  %225 = vmatmul.mubr.f32.gmra.mrb[0].mxu0 %v23
  %v226 = vpop.f32.mrb[0].mxu0
  %v227 = vadd.f32 0.0, %v226
  %v228 = vpop.f32.mrb[0].mxu0
  %229 = vdwg.mxu0
  %v230 = vmul.f32 %v212, 2.0
  %v231 = vmul.f32 %v217, 2.0
  %v232 = vmul.f32 %v222, 2.0
  %v233 = vmul.f32 %v227, 2.0
  %v234 = vsub.f32 %v111, %v230
  %v235 = vsub.f32 %v116, %v231
  %v236 = vsub.f32 %v121, %v232
  %v237 = vsub.f32 %v126, %v233
  %v238 = vld [vmem:[%s4] sm:$0x1]
  %v240 = vlaneseq
  %v241 = vshrl.u32 %v240, 7
  %v242 = vsub.s32 0, %v241
  %v243 = vrot.slane %v238, %v242
  %v245 = vadd.f32 %v234, %v243
  %v246 = vadd.f32 %v235, %v243
  %v247 = vadd.f32 %v236, %v243
  %v248 = vadd.f32 %v237, %v243
  %v249 = vld [vmem:[%s3] sm:$0x1]
  %v251 = vlaneseq
  %v252 = vshrl.u32 %v251, 7
  %v253 = vsub.s32 0, %v252
  %v254 = vrot.slane %v249, %v253
  %v256 = vsub.f32 %v254, %v245
  %v257 = vsub.f32 %v254, %v246
  %v258 = vsub.f32 %v254, %v247
  %v259 = vsub.f32 %v254, %v248
  %v260 = vmul.f32 %v256, 0.5
  %v261 = vmul.f32 %v257, 0.5
  %v262 = vmul.f32 %v258, 0.5
  %v263 = vmul.f32 %v259, 0.5
  %v264 = vmul.f32 %v260, 1.442695
  %v265 = vpow.pop %v264
  %v266 = vmul.f32 %v261, 1.442695
  %v267 = vpow.pop %v266
  %v268 = vmul.f32 %v262, 1.442695
  %v269 = vpow.pop %v268
  %v270 = vmul.f32 %v263, 1.442695
  %v271 = vpow.pop %v270
  %272 = vadd.xlane.f32.xlu0 %v265
  %v273 = vpop.xlane.xlu0 %272
  %274 = vadd.xlane.f32.xlu0 %v267
  %v275 = vpop.xlane.xlu0 %274
  %276 = vadd.xlane.f32.xlu0 %v269
  %v277 = vpop.xlane.xlu0 %276
  %278 = vadd.xlane.f32.xlu0 %v271
  %v279 = vpop.xlane.xlu0 %278
  %v280 = vadd.f32 %v273, 1e-10
  %v281 = vadd.f32 %v275, 1e-10
  %v282 = vadd.f32 %v277, 1e-10
  %v283 = vadd.f32 %v279, 1e-10
  %v284 = vrcp.pop %v280
  %v285 = vmul.f32 %v265, %v284
  %v286 = vrcp.pop %v281
  %v287 = vmul.f32 %v267, %v286
  %v288 = vrcp.pop %v282
  %v289 = vmul.f32 %v269, %v288
  %v290 = vrcp.pop %v283
  %v291 = vmul.f32 %v271, %v290
  %292 = vst [vmem:[%s5] sm:$0xff] %v285
  %293 = vst [vmem:[%s5 + $0x8] sm:$0xff] %v287
  %294 = vst [vmem:[%s5 + $0x10] sm:$0xff] %v289
  %295 = vst [vmem:[%s5 + $0x18] sm:$0xff] %v291
  // Predicated region
  $region22: #{gmm_compute_prob.1} parent=0 // pred_check
    _
  $region23: #{gmm_compute_prob.1} parent=0 // pred_check_branch
    %297 = sbr.rel (0) target = $region25
  $region24: #{gmm_compute_prob.1} parent=0 // pred_region
    _
  $region25: #{gmm_compute_prob.1} parent=0 // pred_fallthru
    _
  // Predicated region
  $region26: #{gmm_compute_prob.1} parent=0 // pred_check
    _
  $region27: #{gmm_compute_prob.1} parent=0 // pred_check_branch
    %299 = sbr.rel (0) target = $region29
  $region28: #{gmm_compute_prob.1} parent=0 // pred_region
    _
  $region29: #{gmm_compute_prob.1} parent=0 // pred_fallthru
    _

</llo_original>
